<compile_context>
chip_gen: v7x
topology: tpu7x:2x2x1
jax: 0.10.0
libtpu: 0.0.40
codegen_flags: <defaults>
</compile_context>

<pallas_src>
import jax
import jax.numpy as jnp
from jax.experimental import pallas as pl
from jax.experimental.pallas import tpu as pltpu


# Padded sizes (lane multiples of 128, sublane multiples of 8).
_IN_RAW, _OUT_RAW = 360, 6
_IN_PAD, _OUT_PAD = 384, 128


# ---------------------------------------------------------------------------
# Fused kernel: one matmul + bias + masked softmax per batch tile.
# ---------------------------------------------------------------------------
def _fused_kernel(x_ref, w_ref, b_ref, o_ref):
    logits = jnp.dot(x_ref[...], w_ref[...],
                     preferred_element_type=jnp.float32) + b_ref[...]
    # Masked, numerically stable softmax over the 6 valid lanes (PyTorch dim=1).
    lane = jax.lax.broadcasted_iota(jnp.int32, logits.shape, 1)
    masked = jnp.where(lane < _OUT_RAW, logits, -jnp.inf)
    m = jnp.max(masked, axis=-1, keepdims=True)
    e = jnp.exp(masked - m)                      # exp(-inf) == 0 on padded lanes
    s = jnp.sum(e, axis=-1, keepdims=True)
    o_ref[...] = e / s                           # exact normalization


# ---------------------------------------------------------------------------
# Parameters
# ---------------------------------------------------------------------------
_DIMS = [(360, 3000), (3000, 300), (300, 200), (200, 90)] + [(90, 90)] * 10 + [(90, 6)]


def init_params(key):
    """Deterministic synthetic params with PyTorch nn.Linear shapes/init style, W:(out,in)."""
    params = []
    for d_in, d_out in _DIMS:
        key, kw, kb = jax.random.split(key, 3)
        bound = 1.0 / (d_in ** 0.5)
        w = jax.random.uniform(kw, (d_out, d_in), jnp.float32, -bound, bound)
        b = jax.random.uniform(kb, (d_out,), jnp.float32, -bound, bound)
        params.append((w, b))
    return params


def pack_params(params):
    """Compose all 15 affine layers exactly in f32 and pad to (384, 128) / (1, 128)."""
    w0, b0 = params[0]
    a = w0.T.astype(jnp.float32)                 # (360, 3000)
    c = b0.astype(jnp.float32)                   # (3000,)
    for w, b in params[1:]:
        wt = w.T.astype(jnp.float32)             # (in, out)
        a = a @ wt                               # (360, out)
        c = c @ wt + b.astype(jnp.float32)       # (out,)
    a_pad = jnp.zeros((_IN_PAD, _OUT_PAD), jnp.float32).at[:_IN_RAW, :_OUT_RAW].set(a)
    c_pad = jnp.zeros((1, _OUT_PAD), jnp.float32).at[0, :_OUT_RAW].set(c)
    return a_pad, c_pad


# ---------------------------------------------------------------------------
# Forward
# ---------------------------------------------------------------------------
def simplenet_forward(x, packed):
    w_eff, b_eff = packed
    h = x.reshape(-1, _IN_RAW).astype(jnp.float32)       # x.view(-1, 360)
    bsz = h.shape[0]

    # Batch tiling: small batches use one 8-row tile; large batches use 256-row
    # tiles (full MXU rows on v6e/v7x) sharded across cores via the parallel axis.
    tile_b = 256 if bsz > 256 else max(8, ((bsz + 7) // 8) * 8)
    n_tiles = (bsz + tile_b - 1) // tile_b
    bp = n_tiles * tile_b
    x_pad = jnp.zeros((bp, _IN_PAD), jnp.float32).at[:bsz, :_IN_RAW].set(h)

    flops = 2 * bp * _IN_PAD * _OUT_PAD
    bytes_accessed = (x_pad.size + w_eff.size + b_eff.size + bp * _OUT_PAD) * 4

    out_pad = pl.pallas_call(
        _fused_kernel,
        out_shape=jax.ShapeDtypeStruct((bp, _OUT_PAD), jnp.float32),
        grid=(n_tiles,),
        in_specs=[
            pl.BlockSpec((tile_b, _IN_PAD), lambda b: (b, 0)),     # batch-tiled input
            pl.BlockSpec((_IN_PAD, _OUT_PAD), lambda b: (0, 0)),   # VMEM-resident weights
            pl.BlockSpec((1, _OUT_PAD), lambda b: (0, 0)),         # VMEM-resident bias
        ],
        out_specs=pl.BlockSpec((tile_b, _OUT_PAD), lambda b: (b, 0)),
        compiler_params=pltpu.CompilerParams(
            dimension_semantics=("parallel",),   # shards batch tiles across v7x's 2 TCs
        ),
        cost_estimate=pl.CostEstimate(
            flops=flops, transcendentals=bp * _OUT_PAD, bytes_accessed=bytes_accessed),
    )(x_pad, w_eff, b_eff)
    return out_pad[:bsz, :_OUT_RAW]


def _reference_forward(x, params):
    """Pure-JAX f32 reference of the PyTorch module (sequential layers, for checking)."""
    h = x.reshape(-1, _IN_RAW).astype(jnp.float32)
    for w, b in params:
        h = h @ w.T + b
    h = h - jnp.max(h, axis=-1, keepdims=True)
    e = jnp.exp(h)
    return e / jnp.sum(e, axis=-1, keepdims=True)


if __name__ == "__main__":
    key = jax.random.PRNGKey(0)
    key, kx = jax.random.split(key)
    # Input consistent with x.view(-1, 6 * 15 * 4): (batch=2, 6, 15, 4)
    x = jax.random.normal(kx, (2, 6, 15, 4), dtype=jnp.float32)
    params = init_params(key)
    packed = pack_params(params)

    out = jax.block_until_ready(simplenet_forward(x, packed))

    assert out.shape == (2, 6), out.shape
    # softmax rows sum to 1 (exact divide -> tight tolerance)
    assert bool(jnp.all(jnp.abs(jnp.sum(out, axis=1) - 1.0) < 1e-4))
    # cross-check against the sequential pure-JAX f32 reference
    ref = _reference_forward(x, params)
    assert bool(jnp.all(jnp.abs(out - ref) < 1e-3)), float(jnp.max(jnp.abs(out - ref)))

    print("KERNEL_OK")
</pallas_src>

<mosaic_0001>
module attributes {stable_mosaic.version = 11 : i64} {
  func.func @_fused_kernel(%arg0: i32, %arg1: memref<8x384xf32, #tpu.memory_space<vmem>>, %arg2: memref<384x128xf32, #tpu.memory_space<vmem>>, %arg3: memref<1x128xf32, #tpu.memory_space<vmem>>, %arg4: memref<8x128xf32, #tpu.memory_space<vmem>>) attributes {dimension_semantics = [#tpu.dimension_semantics<parallel>], iteration_bounds = array<i64: 1>, scalar_prefetch = 0 : i64, scratch_operands = 0 : i64, tpu.core_type = #tpu.core_type<tc>, window_params = [{transform_indices = @transform_0, window_bounds = array<i64: 8, 384>}, {pipeline_mode = #tpu.pipeline_mode<synchronous>, transform_indices = @transform_1, window_bounds = array<i64: 384, 128>}, {pipeline_mode = #tpu.pipeline_mode<synchronous>, transform_indices = @transform_2, window_bounds = array<i64: 1, 128>}, {transform_indices = @transform_3, window_bounds = array<i64: 8, 128>}]} {
    %c0 = arith.constant 0 : index
    %c0_0 = arith.constant 0 : index
    %0 = vector.load %arg1[%c0, %c0_0] : memref<8x384xf32, #tpu.memory_space<vmem>>, vector<8x384xf32>
    %c0_1 = arith.constant 0 : index
    %c0_2 = arith.constant 0 : index
    %1 = vector.load %arg2[%c0_1, %c0_2] : memref<384x128xf32, #tpu.memory_space<vmem>>, vector<384x128xf32>
    %cst = arith.constant dense<0.000000e+00> : vector<8x128xf32>
    %2 = tpu.matmul %0, %1, %cst {dimension_numbers = #tpu.dot_dimension_numbers<[1], [0], [0], [1], [0, 0, 1, 1], [], []>} : vector<8x384xf32>, vector<384x128xf32>, vector<8x128xf32> -> vector<8x128xf32>
    %c0_3 = arith.constant 0 : index
    %c0_4 = arith.constant 0 : index
    %3 = vector.load %arg3[%c0_3, %c0_4] : memref<1x128xf32, #tpu.memory_space<vmem>>, vector<1x128xf32>
    %4 = vector.broadcast %3 : vector<1x128xf32> to vector<8x128xf32>
    %5 = arith.addf %2, %4 : vector<8x128xf32>
    %6 = tpu.iota {dimensions = array<i32: 1>} : vector<8x128xi32>
    %c6_i32 = arith.constant 6 : i32
    %7 = vector.broadcast %c6_i32 : i32 to vector<8x128xi32>
    %8 = arith.cmpi slt, %6, %7 : vector<8x128xi32>
    %cst_5 = arith.constant 0xFF800000 : f32
    %9 = vector.broadcast %cst_5 : f32 to vector<8x128xf32>
    %10 = arith.select %8, %5, %9 : vector<8x128xi1>, vector<8x128xf32>
    %cst_6 = arith.constant dense<0xFF800000> : vector<8xf32>
    %11 = vector.multi_reduction <maximumf>, %10, %cst_6 [1] : vector<8x128xf32> to vector<8xf32>
    %12 = vector.shape_cast %11 : vector<8xf32> to vector<8x1xf32>
    %13 = vector.broadcast %12 : vector<8x1xf32> to vector<8x128xf32>
    %14 = arith.subf %10, %13 : vector<8x128xf32>
    %15 = math.exp %14 : vector<8x128xf32>
    %cst_7 = arith.constant dense<0.000000e+00> : vector<8xf32>
    %16 = vector.multi_reduction <add>, %15, %cst_7 [1] : vector<8x128xf32> to vector<8xf32>
    %17 = vector.shape_cast %16 : vector<8xf32> to vector<8x1xf32>
    %18 = vector.broadcast %17 : vector<8x1xf32> to vector<8x128xf32>
    %19 = arith.divf %15, %18 : vector<8x128xf32>
    %c0_8 = arith.constant 0 : index
    %c0_9 = arith.constant 0 : index
    %20 = vector.load %arg4[%c0_8, %c0_9] : memref<8x128xf32, #tpu.memory_space<vmem>>, vector<8x128xf32>
    tpu.vector_store %arg4[%c0_8, %c0_9], %19 {strides = array<i32>} : memref<8x128xf32, #tpu.memory_space<vmem>>, vector<8x128xf32>,
    return
  }
  func.func @transform_0(%arg0: i32) -> (i32, i32) {
    %c0_i32 = arith.constant 0 : i32
    %c0_i32_0 = arith.constant 0 : i32
    return %arg0, %c0_i32 : i32, i32
  }
  func.func @transform_1(%arg0: i32) -> (i32, i32) {
    %c0_i32 = arith.constant 0 : i32
    %c0_i32_0 = arith.constant 0 : i32
    %c0_i32_1 = arith.constant 0 : i32
    return %c0_i32, %c0_i32_0 : i32, i32
  }
  func.func @transform_2(%arg0: i32) -> (i32, i32) {
    %c0_i32 = arith.constant 0 : i32
    %c0_i32_0 = arith.constant 0 : i32
    %c0_i32_1 = arith.constant 0 : i32
    return %c0_i32, %c0_i32_0 : i32, i32
  }
  func.func @transform_3(%arg0: i32) -> (i32, i32) {
    %c0_i32 = arith.constant 0 : i32
    %c0_i32_0 = arith.constant 0 : i32
    return %arg0, %c0_i32 : i32, i32
  }
}

</mosaic_0001>

<llo_original>
// kernel: tpu_custom_call.1
$region0: #{tpu_custom_call.1}
  #allocation0 [shape = 'u32[]', space=smem, size = 0x4, offset = 0x4, fixed_abs, tag = 'smem constant byte address 0x4 - core index']
  #allocation1 [shape = 'u32[144,128]{1,0:T(1,128)}', space=vmem, size = 0x12000, scoped, tag = 'internal scratch']
  %s0 = inlined_call_operand.hbm [shape: f32[8,384], index: 0, kind: input, shape index: {}]
  %s1 = inlined_call_operand.hbm [shape: f32[384,128], index: 1, kind: input, shape index: {}]
  %s2 = inlined_call_operand.vmem [shape: f32[1,128], index: 2, kind: input, shape index: {}]
  %s3 = inlined_call_operand.hbm [shape: f32[8,128], index: 3, kind: output, shape index: {}]
  %s4 = sld [smem:[#allocation0]]
  $region30: #{tpu_custom_call.1} parent=0
    _
  %s6 = ssub.s32 1, %s4
  %s7 = scalar_select 0, %s6, %s4
  $region1: #{tpu_custom_call.1} parent=0
    #allocation2 [shape = 'u8[12288]{0}', space=vmem, size = 0x3000, scoped, tag = 'input window, operand 0, single buffered']
    #allocation3 [shape = 's32[1]{0}', space=sflag, size = 0x4, scoped, tag = 'scoped memory for tpu_custom_call.1']
    #allocation4 [shape = 's32[1]{0}', space=sflag, size = 0x4, scoped, tag = 'scoped memory for tpu_custom_call.1']
    #allocation5 [shape = 'u8[196608]{0}', space=vmem, size = 0x30000, scoped, tag = 'input window, operand 1, single buffered']
    #allocation6 [shape = 's32[1]{0}', space=sflag, size = 0x4, scoped, tag = 'scoped memory for tpu_custom_call.1']
    #allocation7 [shape = 'u8[4096]{0}', space=vmem, size = 0x1000, scoped, tag = 'output window, operand 0, single buffered']
    %8 = vsyncpa [#allocation3], 0
    %9 = vsyncpa [#allocation6], 0
    %10 = vsyncpa [#allocation4], 0
    // Predicated region
    $region2: #{tpu_custom_call.1} parent=1 // pred_check
      _
    $region3: #{tpu_custom_call.1} parent=1 // pred_check_branch
      %12 = sbr.rel (0) target = $region5
    $region4: #{tpu_custom_call.1} parent=1 // pred_region
      %s14 = ssub.s32 384, 384
      %15 = vsyncadd [#allocation3], %s14
      %s17 = sshll.u32 [#allocation2], 4
      %s18 = int_to_ptr.vmem [resolvable:$true] %s17
      %20 = dma.hbm_to_vmem [thread:$0]  %s0, 384, %s18, [#allocation3]
    $region5: #{tpu_custom_call.1} parent=1 // pred_fallthru
      _
    // Predicated region
    $region6: #{tpu_custom_call.1} parent=1 // pred_check
      _
    $region7: #{tpu_custom_call.1} parent=1 // pred_check_branch
      %22 = sbr.rel (0) target = $region9
    $region8: #{tpu_custom_call.1} parent=1 // pred_region
      %s24 = ssub.s32 6144, 6144
      %25 = vsyncadd [#allocation6], %s24
      %s26 = sshll.u32 [#allocation5], 4
      %s27 = int_to_ptr.vmem [resolvable:$true] %s26
      %32 = dma.hbm_to_vmem [thread:$0]  %s1, 6144, %s27, [#allocation6], 128, 128, 8
    $region9: #{tpu_custom_call.1} parent=1 // pred_fallthru
      _
    // Predicated region
    $region10: #{tpu_custom_call.1} parent=1 // pred_check
      _
    $region11: #{tpu_custom_call.1} parent=1 // pred_check_branch
      %34 = sbr.rel (0) target = $region13
    $region12: #{tpu_custom_call.1} parent=1 // pred_region
      _
    $region13: #{tpu_custom_call.1} parent=1 // pred_fallthru
      _
    // Predicated region
    $region14: #{tpu_custom_call.1} parent=1 // pred_check
      _
    $region15: #{tpu_custom_call.1} parent=1 // pred_check_branch
      %36 = sbr.rel (0) target = $region17
    $region16: #{tpu_custom_call.1} parent=1 // pred_region
      %37 = dma.done [#allocation3], 384
    $region17: #{tpu_custom_call.1} parent=1 // pred_fallthru
      _
    // Predicated region
    $region18: #{tpu_custom_call.1} parent=1 // pred_check
      _
    $region19: #{tpu_custom_call.1} parent=1 // pred_check_branch
      %39 = sbr.rel (0) target = $region21
    $region20: #{tpu_custom_call.1} parent=1 // pred_region
      %40 = dma.done [#allocation6], 6144
    $region21: #{tpu_custom_call.1} parent=1 // pred_fallthru
      _
    %v41 = vld [vmem:[#allocation2] sm:$0xff]
    %v42 = vld [vmem:[#allocation2 + $0x8] sm:$0xff]
    %v43 = vld [vmem:[#allocation2 + $0x10] sm:$0xff]
    %v44 = vld [vmem:[#allocation5] sm:$0xff]
    %v45 = vld [vmem:[#allocation5 + $0x8] sm:$0xff]
    %v46 = vld [vmem:[#allocation5 + $0x10] sm:$0xff]
    %v47 = vld [vmem:[#allocation5 + $0x18] sm:$0xff]
    %v48 = vld [vmem:[#allocation5 + $0x20] sm:$0xff]
    %v49 = vld [vmem:[#allocation5 + $0x28] sm:$0xff]
    %v50 = vld [vmem:[#allocation5 + $0x30] sm:$0xff]
    %v51 = vld [vmem:[#allocation5 + $0x38] sm:$0xff]
    %v52 = vld [vmem:[#allocation5 + $0x40] sm:$0xff]
    %v53 = vld [vmem:[#allocation5 + $0x48] sm:$0xff]
    %v54 = vld [vmem:[#allocation5 + $0x50] sm:$0xff]
    %v55 = vld [vmem:[#allocation5 + $0x58] sm:$0xff]
    %v56 = vld [vmem:[#allocation5 + $0x60] sm:$0xff]
    %v57 = vld [vmem:[#allocation5 + $0x68] sm:$0xff]
    %v58 = vld [vmem:[#allocation5 + $0x70] sm:$0xff]
    %v59 = vld [vmem:[#allocation5 + $0x78] sm:$0xff]
    %v60 = vld [vmem:[#allocation5 + $0x80] sm:$0xff]
    %v61 = vld [vmem:[#allocation5 + $0x88] sm:$0xff]
    %v62 = vld [vmem:[#allocation5 + $0x90] sm:$0xff]
    %v63 = vld [vmem:[#allocation5 + $0x98] sm:$0xff]
    %v64 = vld [vmem:[#allocation5 + $0xa0] sm:$0xff]
    %v65 = vld [vmem:[#allocation5 + $0xa8] sm:$0xff]
    %v66 = vld [vmem:[#allocation5 + $0xb0] sm:$0xff]
    %v67 = vld [vmem:[#allocation5 + $0xb8] sm:$0xff]
    %v68 = vld [vmem:[#allocation5 + $0xc0] sm:$0xff]
    %v69 = vld [vmem:[#allocation5 + $0xc8] sm:$0xff]
    %v70 = vld [vmem:[#allocation5 + $0xd0] sm:$0xff]
    %v71 = vld [vmem:[#allocation5 + $0xd8] sm:$0xff]
    %v72 = vld [vmem:[#allocation5 + $0xe0] sm:$0xff]
    %v73 = vld [vmem:[#allocation5 + $0xe8] sm:$0xff]
    %v74 = vld [vmem:[#allocation5 + $0xf0] sm:$0xff]
    %v75 = vld [vmem:[#allocation5 + $0xf8] sm:$0xff]
    %v76 = vld [vmem:[#allocation5 + $0x100] sm:$0xff]
    %v77 = vld [vmem:[#allocation5 + $0x108] sm:$0xff]
    %v78 = vld [vmem:[#allocation5 + $0x110] sm:$0xff]
    %v79 = vld [vmem:[#allocation5 + $0x118] sm:$0xff]
    %v80 = vld [vmem:[#allocation5 + $0x120] sm:$0xff]
    %v81 = vld [vmem:[#allocation5 + $0x128] sm:$0xff]
    %v82 = vld [vmem:[#allocation5 + $0x130] sm:$0xff]
    %v83 = vld [vmem:[#allocation5 + $0x138] sm:$0xff]
    %v84 = vld [vmem:[#allocation5 + $0x140] sm:$0xff]
    %v85 = vld [vmem:[#allocation5 + $0x148] sm:$0xff]
    %v86 = vld [vmem:[#allocation5 + $0x150] sm:$0xff]
    %v87 = vld [vmem:[#allocation5 + $0x158] sm:$0xff]
    %v88 = vld [vmem:[#allocation5 + $0x160] sm:$0xff]
    %v89 = vld [vmem:[#allocation5 + $0x168] sm:$0xff]
    %v90 = vld [vmem:[#allocation5 + $0x170] sm:$0xff]
    %v91 = vld [vmem:[#allocation5 + $0x178] sm:$0xff]
    %v92 = vld [vmem:[%s2] sm:$0x1]
    %v94 = vlaneseq
    %v95 = vshrl.u32 %v94, 7
    %v96 = vsub.s32 0, %v95
    %v97 = vrot.slane %v92, %v96
    %99 = vmatprep.subr.mxu0 0.0
    %100 = vmatpush1.msra.mxu0 %v44
    %101 = vmatprep.subr.mxu0 0.0
    %102 = vmatpush1.msra.mxu0 %v45
    %103 = vmatprep.subr.mxu0 0.0
    %104 = vmatpush1.msra.mxu0 %v46
    %105 = vmatprep.subr.mxu0 0.0
    %106 = vmatpush1.msra.mxu0 %v47
    %107 = vmatprep.subr.mxu0 0.0
    %108 = vmatpush1.msra.mxu0 %v48
    %109 = vmatprep.subr.mxu0 0.0
    %110 = vmatpush1.msra.mxu0 %v49
    %111 = vmatprep.subr.mxu0 0.0
    %112 = vmatpush1.msra.mxu0 %v50
    %113 = vmatprep.subr.mxu0 0.0
    %114 = vmatpush1.msra.mxu0 %v51
    %115 = vmatprep.subr.mxu0 0.0
    %116 = vmatpush1.msra.mxu0 %v52
    %117 = vmatprep.subr.mxu0 0.0
    %118 = vmatpush1.msra.mxu0 %v53
    %119 = vmatprep.subr.mxu0 0.0
    %120 = vmatpush1.msra.mxu0 %v54
    %121 = vmatprep.subr.mxu0 0.0
    %122 = vmatpush1.msra.mxu0 %v55
    %123 = vmatprep.subr.mxu0 0.0
    %124 = vmatpush1.msra.mxu0 %v56
    %125 = vmatprep.subr.mxu0 0.0
    %126 = vmatpush1.msra.mxu0 %v57
    %127 = vmatprep.subr.mxu0 0.0
    %128 = vmatpush1.msra.mxu0 %v58
    %129 = vmatprep.subr.mxu0 0.0
    %130 = vmatpush1.msra.mxu0 %v59
    %131 = vmatprep.subr.mxu0 0.0
    %132 = vmatpush1.msra.mxu0 %v60
    %133 = vmatprep.subr.mxu0 0.0
    %134 = vmatpush1.msra.mxu0 %v61
    %135 = vmatprep.subr.mxu0 0.0
    %136 = vmatpush1.msra.mxu0 %v62
    %137 = vmatprep.subr.mxu0 0.0
    %138 = vmatpush1.msra.mxu0 %v63
    %139 = vmatprep.subr.mxu0 0.0
    %140 = vmatpush1.msra.mxu0 %v64
    %141 = vmatprep.subr.mxu0 0.0
    %142 = vmatpush1.msra.mxu0 %v65
    %143 = vmatprep.subr.mxu0 0.0
    %144 = vmatpush1.msra.mxu0 %v66
    %145 = vmatprep.subr.mxu0 0.0
    %146 = vmatpush1.msra.mxu0 %v67
    %147 = vmatprep.subr.mxu0 0.0
    %148 = vmatpush1.msra.mxu0 %v68
    %149 = vmatprep.subr.mxu0 0.0
    %150 = vmatpush1.msra.mxu0 %v69
    %151 = vmatprep.subr.mxu0 0.0
    %152 = vmatpush1.msra.mxu0 %v70
    %153 = vmatprep.subr.mxu0 0.0
    %154 = vmatpush1.msra.mxu0 %v71
    %155 = vmatprep.subr.mxu0 0.0
    %156 = vmatpush1.msra.mxu0 %v72
    %157 = vmatprep.subr.mxu0 0.0
    %158 = vmatpush1.msra.mxu0 %v73
    %159 = vmatprep.subr.mxu0 0.0
    %160 = vmatpush1.msra.mxu0 %v74
    %161 = vmatprep.subr.mxu0 0.0
    %162 = vmatpush1.msra.mxu0 %v75
    %163 = vmatprep.mubr.f32.mxu0 %v42
    %164 = vmatmul.mubr.f32.gmra.mrb[0].mxu0 %v41
    %v165 = vpop.f32.mrb[0].mxu0
    %v166 = vadd.f32 %v97, %v165
    %v167 = vpop.f32.mrb[0].mxu0
    %168 = vdwg.mxu0
    %169 = vmatprep.subr.mxu0 0.0
    %170 = vmatpush1.msra.mxu0 %v76
    %171 = vmatprep.subr.mxu0 0.0
    %172 = vmatpush1.msra.mxu0 %v77
    %173 = vmatprep.subr.mxu0 0.0
    %174 = vmatpush1.msra.mxu0 %v78
    %175 = vmatprep.subr.mxu0 0.0
    %176 = vmatpush1.msra.mxu0 %v79
    %177 = vmatprep.subr.mxu0 0.0
    %178 = vmatpush1.msra.mxu0 %v80
    %179 = vmatprep.subr.mxu0 0.0
    %180 = vmatpush1.msra.mxu0 %v81
    %181 = vmatprep.subr.mxu0 0.0
    %182 = vmatpush1.msra.mxu0 %v82
    %183 = vmatprep.subr.mxu0 0.0
    %184 = vmatpush1.msra.mxu0 %v83
    %185 = vmatprep.subr.mxu0 0.0
    %186 = vmatpush1.msra.mxu0 %v84
    %187 = vmatprep.subr.mxu0 0.0
    %188 = vmatpush1.msra.mxu0 %v85
    %189 = vmatprep.subr.mxu0 0.0
    %190 = vmatpush1.msra.mxu0 %v86
    %191 = vmatprep.subr.mxu0 0.0
    %192 = vmatpush1.msra.mxu0 %v87
    %193 = vmatprep.subr.mxu0 0.0
    %194 = vmatpush1.msra.mxu0 %v88
    %195 = vmatprep.subr.mxu0 0.0
    %196 = vmatpush1.msra.mxu0 %v89
    %197 = vmatprep.subr.mxu0 0.0
    %198 = vmatpush1.msra.mxu0 %v90
    %199 = vmatprep.subr.mxu0 0.0
    %200 = vmatpush1.msra.mxu0 %v91
    %201 = vmatprep.subr.mxu0 0.0
    %202 = vmatpush1.msra.mxu0 0.0
    %203 = vmatprep.subr.mxu0 0.0
    %204 = vmatpush1.msra.mxu0 0.0
    %205 = vmatprep.subr.mxu0 0.0
    %206 = vmatpush1.msra.mxu0 0.0
    %207 = vmatprep.subr.mxu0 0.0
    %208 = vmatpush1.msra.mxu0 0.0
    %209 = vmatprep.subr.mxu0 0.0
    %210 = vmatpush1.msra.mxu0 0.0
    %211 = vmatprep.subr.mxu0 0.0
    %212 = vmatpush1.msra.mxu0 0.0
    %213 = vmatprep.subr.mxu0 0.0
    %214 = vmatpush1.msra.mxu0 0.0
    %215 = vmatprep.subr.mxu0 0.0
    %216 = vmatpush1.msra.mxu0 0.0
    %217 = vmatprep.subr.mxu0 0.0
    %218 = vmatpush1.msra.mxu0 0.0
    %219 = vmatprep.subr.mxu0 0.0
    %220 = vmatpush1.msra.mxu0 0.0
    %221 = vmatprep.subr.mxu0 0.0
    %222 = vmatpush1.msra.mxu0 0.0
    %223 = vmatprep.subr.mxu0 0.0
    %224 = vmatpush1.msra.mxu0 0.0
    %225 = vmatprep.subr.mxu0 0.0
    %226 = vmatpush1.msra.mxu0 0.0
    %227 = vmatprep.subr.mxu0 0.0
    %228 = vmatpush1.msra.mxu0 0.0
    %229 = vmatprep.subr.mxu0 0.0
    %230 = vmatpush1.msra.mxu0 0.0
    %231 = vmatprep.subr.mxu0 0.0
    %232 = vmatpush1.msra.mxu0 0.0
    %233 = vmatprep.mubr.f32.mxu0 0.0
    %234 = vmatmul.mubr.f32.gmra.mrb[0].mxu0 %v43
    %v235 = vpop.f32.mrb[0].mxu0
    %v236 = vadd.f32 %v166, %v235
    %v237 = vpop.f32.mrb[0].mxu0
    %238 = vdwg.mxu0
    %v239 = vlaneseq
    %v240 = vand.u32 %v239, 127
    %vm241 = vcmp.lt.s32.totalorder %v240, 6
    %v242 = vsel %vm241, %v236, -inf
    %243 = vmax.xlane.f32.xlu0 %v242
    %v244 = vpop.xlane.xlu0 %243
    %v245 = vsub.f32 %v242, %v244
    %v246 = vmul.f32 %v245, 1.442695
    %v247 = vpow.pop %v246
    %248 = vadd.xlane.f32.xlu0 %v247
    %v249 = vpop.xlane.xlu0 %248
    %v250 = vrcp.pop %v249
    %v251 = vmul.f32 %v247, %v250
    %252 = vst [vmem:[#allocation7] sm:$0xff] %v251
    // Predicated region
    $region22: #{tpu_custom_call.1} parent=1 // pred_check
      _
    $region23: #{tpu_custom_call.1} parent=1 // pred_check_branch
      %254 = sbr.rel (0) target = $region25
    $region24: #{tpu_custom_call.1} parent=1 // pred_region
      %s256 = ssub.s32 128, 128
      %257 = vsyncadd [#allocation4], %s256
      %s259 = sshll.u32 [#allocation7], 4
      %s260 = int_to_ptr.vmem [resolvable:$true] %s259
      %262 = dma.vmem_to_hbm [thread:$0]  %s260, 128, %s3, [#allocation4]
    $region25: #{tpu_custom_call.1} parent=1 // pred_fallthru
      _
    // Predicated region
    $region26: #{tpu_custom_call.1} parent=1 // pred_check
      _
    $region27: #{tpu_custom_call.1} parent=1 // pred_check_branch
      %264 = sbr.rel (0) target = $region29
    $region28: #{tpu_custom_call.1} parent=1 // pred_region
      %265 = dma.done [#allocation4], 128
    $region29: #{tpu_custom_call.1} parent=1 // pred_fallthru
      _
    %266 = vsyncpa [#allocation3], 1
    %267 = vsyncpa [#allocation6], 1
    %268 = vsyncpa [#allocation4], 1

</llo_original>
